<compile_context>
chip_gen: v6e
topology: v6e:2x2x1
jax: 0.10.0
libtpu: 0.0.40
codegen_flags: <defaults>
</compile_context>

<pallas_src>
import functools

import jax
import jax.numpy as jnp
import numpy as np
from jax import lax
from jax.experimental import pallas as pl
from jax.experimental.pallas import tpu as pltpu


def _cov_kernel(x_ref, o_ref, *scratch, inv_n, n_total, tile_n, remove_mean,
                single_chunk, ragged, matmul_dtype):
    """One grid step over a (tB, C, tn) spatial chunk of tB batch elements.

    x_ref : (tB, C, tn) VMEM tile.
    o_ref : (tB, C, C) f32 output block, resident across the N grid axis and
            used directly as the accumulator.
    scratch (only when remove_mean and streaming):
      sum_ref   : (tB, C, 1) f32 running sum of the shifted rows.
      shift_ref : (tB, C, 1) f32 per-channel shift (first chunk's mean).
    """
    if single_chunk:
        # Whole spatial extent in one block: exact two-pass centering,
        # identical to the PyTorch forward.
        x = x_ref[...]
        if remove_mean:
            x = x - jnp.mean(x, axis=2, keepdims=True)
        xm = x if matmul_dtype is None else x.astype(matmul_dtype)
        o_ref[...] = inv_n * lax.dot_general(
            xm, xm,
            dimension_numbers=(((2,), (2,)), ((0,), (0,))),
            preferred_element_type=jnp.float32,
        )
        return

    n_idx = pl.program_id(1)
    if remove_mean:
        sum_ref, shift_ref = scratch

    x = x_ref[...]                                            # (tB, C, tn)

    @pl.when(n_idx == 0)
    def _init():
        o_ref[...] = jnp.zeros_like(o_ref)
        if remove_mean:
            sum_ref[...] = jnp.zeros_like(sum_ref)
            # First chunk is always full when streaming (N > tile_n), so its
            # per-channel mean is a cheap shift close to the true mean ->
            # numerically stable one-pass covariance update.
            shift_ref[...] = jnp.mean(x, axis=2, keepdims=True).astype(jnp.float32)

    if remove_mean:
        x = x - shift_ref[...].astype(x.dtype)
    if ragged:
        # Tail chunk: zero out lanes past the true spatial extent. Keeps both
        # the Gram sum and the row sums exact without any wrapper-side pad.
        lane = lax.broadcasted_iota(jnp.int32, x.shape, x.ndim - 1)
        x = jnp.where(lane < (n_total - n_idx * tile_n), x, 0)

    # Batched Gram partial: contract the lane (spatial) axis of both operands;
    # no x.T is materialized at the JAX level.
    xm = x if matmul_dtype is None else x.astype(matmul_dtype)
    o_ref[...] += lax.dot_general(
        xm, xm,
        dimension_numbers=(((2,), (2,)), ((0,), (0,))),
        preferred_element_type=jnp.float32,
    )
    if remove_mean:
        sum_ref[...] += jnp.sum(x, axis=2, keepdims=True).astype(jnp.float32)

    @pl.when(n_idx == pl.num_programs(1) - 1)
    def _finalize():
        cov = o_ref[...] * inv_n
        if remove_mean:
            # cov = (1/N) sum (x-s)(x-s)^T - d d^T,  d = (1/N) sum (x-s).
            # The K=1 outer product runs once per batch block; kept as a
            # dot_general to avoid a (C,1)->(1,C) relayout.
            d = sum_ref[...] * inv_n                          # (tB, C, 1)
            cov = cov - lax.dot_general(
                d, d,
                dimension_numbers=(((2,), (2,)), ((0,), (0,))),
                preferred_element_type=jnp.float32,
            )
        o_ref[...] = cov


def _vmem_capacity_bytes() -> int:
    try:
        return int(pltpu.get_tpu_info().vmem_capacity_bytes)
    except Exception:
        return 64 << 20                      # conservative (v7x per-TC)


def _per_block_target_bytes(vmem_cap: int) -> int:
    """Per-generation per-block target (double-buffered by the pipeline)."""
    if vmem_cap >= (100 << 20):              # 128-MiB VMEM parts (v5e / v6e)
        try:
            kind = jax.devices()[0].device_kind.lower()
        except Exception:
            kind = ""
        if "v5 lite" in kind or "v5lite" in kind or "v5e" in kind:
            return 6 << 20                   # v5e: keep the stream modest
        return 8 << 20                       # v6e: larger chunks, ~86% HBM roofline
    return 6 << 20                           # v7x: 64 MiB VMEM, leave headroom


def _choose_tiles(B, C, N, itemsize, target_bytes, tile_n=None):
    """Pick (tB, tn, num_n): batch block, spatial chunk, #chunks."""
    if tile_n is not None:
        tn = int(tile_n)
        if tn >= N:
            tn = N
        elif tn % 128 != 0:
            raise ValueError("tile_n must be a multiple of 128 when < H*W")
    else:
        max_tn = max(128, ((target_bytes // max(C * itemsize, 1)) // 128) * 128)
        tn = N if N <= max_tn else max_tn
    num_n = -(-N // tn)

    # Batch blocking: pack batch elements per step until the input block (and
    # the resident f32 output block) reach the per-block target. Amortizes the
    # ~0.35 us/step pipeline overhead for small-C / small-N shapes.
    in_bytes = C * tn * itemsize
    out_bytes = 2 * C * C * 4
    cap = min(max(target_bytes // max(in_bytes, 1), 1),
              max(target_bytes // max(out_bytes, 1), 1),
              B)
    tB = 1
    for t in range(int(cap), 0, -1):
        if B % t == 0:
            tB = t
            break
    return tB, tn, num_n


def covariance(x: jax.Array, *, remove_mean: bool = True,
               tile_n: int | None = None, matmul_dtype=None) -> jax.Array:
    """Covariance(cov_type='norm', remove_mean=remove_mean, dimension_reduction=None).

    Args:
      x: (B, C, H, W) array (NCHW, as in PyTorch).
      remove_mean: subtract the per-(batch, channel) spatial mean first.
      tile_n: optional spatial chunk override (multiple of 128 unless >= H*W);
        mainly for testing the streaming path.
      matmul_dtype: optional cast dtype for the MXU dot (e.g. jnp.bfloat16);
        accumulation stays f32. Default None = full input-dtype numerics.
    Returns:
      (B, C, C) float32 covariance matrices.
    """
    B, C, H, W = x.shape
    N = H * W
    xf = x.reshape(B, C, N)
    itemsize = jnp.dtype(xf.dtype).itemsize

    vmem_cap = _vmem_capacity_bytes()
    target = _per_block_target_bytes(vmem_cap)
    tB, tn, num_n = _choose_tiles(B, C, N, itemsize, target, tile_n)
    single_chunk = (num_n == 1)
    ragged = (not single_chunk) and (N % tn != 0)

    kernel = functools.partial(
        _cov_kernel,
        inv_n=1.0 / N, n_total=N, tile_n=tn, remove_mean=remove_mean,
        single_chunk=single_chunk, ragged=ragged, matmul_dtype=matmul_dtype)

    scratch = []
    if remove_mean and not single_chunk:
        scratch = [pltpu.VMEM((tB, C, 1), jnp.float32),   # running shifted sums
                   pltpu.VMEM((tB, C, 1), jnp.float32)]   # per-channel shift

    # Double-buffered input + (conservatively) double-buffered output block +
    # lane-padded scratch + internal headroom.
    vmem_need = (2 * tB * C * tn * itemsize + 2 * tB * C * C * 4
                 + 2 * tB * C * 128 * 4 + (2 << 20))
    vmem_limit = max(32 << 20, vmem_need + (vmem_need >> 2))
    vmem_limit = min(vmem_limit, int(vmem_cap * 0.85))     # never the physical max
    vmem_limit = int(max(vmem_limit, min(vmem_need, vmem_cap)))

    return pl.pallas_call(
        kernel,
        out_shape=jax.ShapeDtypeStruct((B, C, C), jnp.float32),
        grid_spec=pltpu.PrefetchScalarGridSpec(
            num_scalar_prefetch=0,
            grid=(B // tB, num_n),
            in_specs=[pl.BlockSpec((tB, C, tn), lambda b, n: (b, 0, n))],
            out_specs=pl.BlockSpec((tB, C, C), lambda b, n: (b, 0, 0)),
            scratch_shapes=scratch,
        ),
        compiler_params=pltpu.CompilerParams(
            dimension_semantics=("parallel", "arbitrary"),
            vmem_limit_bytes=vmem_limit,
        ),
        cost_estimate=pl.CostEstimate(
            flops=int(2 * B * C * C * N),
            transcendentals=0,
            bytes_accessed=int(B * C * N * itemsize + B * C * C * 4),
        ),
    )(xf)


def _reference(x: jax.Array, *, remove_mean: bool = True) -> jax.Array:
    """Pure-JAX reference mirroring the PyTorch forward (two-pass centering)."""
    B, C, H, W = x.shape
    N = H * W
    if remove_mean:
        x = x - jnp.mean(x, axis=(2, 3), keepdims=True)
    xf = x.reshape(B, C, N)
    return (1.0 / N) * jnp.einsum("bcn,bdn->bcd", xf, xf)


if __name__ == "__main__":
    key = jax.random.PRNGKey(0)
    B, C, H, W = 2, 16, 16, 16
    x = jax.random.normal(key, (B, C, H, W), dtype=jnp.float32)
    ref = _reference(x, remove_mean=True)

    # Default path: single spatial chunk, exact in-kernel centering, batch-blocked.
    out = jax.block_until_ready(covariance(x, remove_mean=True))
    np.testing.assert_allclose(np.asarray(out), np.asarray(ref), rtol=2e-5, atol=2e-5)

    # Forced streaming path: resident accumulator + shifted one-pass centering.
    out2 = jax.block_until_ready(covariance(x, remove_mean=True, tile_n=128))
    np.testing.assert_allclose(np.asarray(out2), np.asarray(ref), rtol=2e-5, atol=2e-5)

    # remove_mean=False path.
    out3 = jax.block_until_ready(covariance(x, remove_mean=False))
    np.testing.assert_allclose(np.asarray(out3),
                               np.asarray(_reference(x, remove_mean=False)),
                               rtol=2e-5, atol=2e-5)

    # Ragged spatial size (20x20 -> N=400): in-kernel tail masking, no jnp.pad.
    x4 = jax.random.normal(jax.random.PRNGKey(1), (2, 16, 20, 20), dtype=jnp.float32)
    out4 = jax.block_until_ready(covariance(x4, remove_mean=True, tile_n=128))
    np.testing.assert_allclose(np.asarray(out4),
                               np.asarray(_reference(x4, remove_mean=True)),
                               rtol=2e-5, atol=2e-5)
    out4b = jax.block_until_ready(covariance(x4, remove_mean=False, tile_n=128))
    np.testing.assert_allclose(np.asarray(out4b),
                               np.asarray(_reference(x4, remove_mean=False)),
                               rtol=2e-5, atol=2e-5)

    # Optional bf16 MXU path (f32 accumulation) — looser tolerance by design.
    out5 = jax.block_until_ready(
        covariance(x, remove_mean=True, matmul_dtype=jnp.bfloat16))
    assert np.all(np.isfinite(np.asarray(out5)))
    np.testing.assert_allclose(np.asarray(out5), np.asarray(ref), rtol=0.0, atol=0.1)

    print("KERNEL_OK")
</pallas_src>

<mosaic_0001>
module attributes {stable_mosaic.version = 11 : i64} {
  func.func @_cov_kernel(%arg0: i32, %arg1: i32, %arg2: memref<2x16x256xf32, #tpu.memory_space<vmem>>, %arg3: memref<2x16x16xf32, #tpu.memory_space<vmem>>) attributes {dimension_semantics = [#tpu.dimension_semantics<parallel>, #tpu.dimension_semantics<arbitrary>], iteration_bounds = array<i64: 1, 1>, scalar_prefetch = 0 : i64, scratch_operands = 0 : i64, tpu.core_type = #tpu.core_type<tc>, window_params = [{transform_indices = @transform_0, window_bounds = array<i64: 2, 16, 256>}, {transform_indices = @transform_1, window_bounds = array<i64: 2, 16, 16>}]} {
    %c0 = arith.constant 0 : index
    %c0_0 = arith.constant 0 : index
    %c0_1 = arith.constant 0 : index
    %0 = vector.load %arg2[%c0, %c0_0, %c0_1] : memref<2x16x256xf32, #tpu.memory_space<vmem>>, vector<2x16x256xf32>
    %cst = arith.constant dense<0.000000e+00> : vector<2x16xf32>
    %1 = vector.multi_reduction <add>, %0, %cst [2] : vector<2x16x256xf32> to vector<2x16xf32>
    %2 = vector.shape_cast %1 : vector<2x16xf32> to vector<2x16x1xf32>
    %cst_2 = arith.constant 2.560000e+02 : f32
    %3 = vector.broadcast %cst_2 : f32 to vector<2x16x1xf32>
    %4 = arith.divf %2, %3 : vector<2x16x1xf32>
    %5 = vector.broadcast %4 : vector<2x16x1xf32> to vector<2x16x256xf32>
    %6 = arith.subf %0, %5 : vector<2x16x256xf32>
    %cst_3 = arith.constant dense<0.000000e+00> : vector<2x16x16xf32>
    %7 = tpu.matmul %6, %6, %cst_3 {dimension_numbers = #tpu.dot_dimension_numbers<[2], [2], [1], [1], [0, 0, 0, 1, 1, 1], [0], [0]>} : vector<2x16x256xf32>, vector<2x16x256xf32>, vector<2x16x16xf32> -> vector<2x16x16xf32>
    %cst_4 = arith.constant 3.906250e-03 : f32
    %8 = vector.broadcast %cst_4 : f32 to vector<2x16x16xf32>
    %9 = arith.mulf %8, %7 : vector<2x16x16xf32>
    %c0_5 = arith.constant 0 : index
    %c0_6 = arith.constant 0 : index
    %c0_7 = arith.constant 0 : index
    %10 = vector.load %arg3[%c0_5, %c0_6, %c0_7] : memref<2x16x16xf32, #tpu.memory_space<vmem>>, vector<2x16x16xf32>
    tpu.vector_store %arg3[%c0_5, %c0_6, %c0_7], %9 {strides = array<i32>} : memref<2x16x16xf32, #tpu.memory_space<vmem>>, vector<2x16x16xf32>,
    return
  }
  func.func @transform_0(%arg0: i32, %arg1: i32) -> (i32, i32, i32) {
    %c0_i32 = arith.constant 0 : i32
    %c0_i32_0 = arith.constant 0 : i32
    return %arg0, %c0_i32, %arg1 : i32, i32, i32
  }
  func.func @transform_1(%arg0: i32, %arg1: i32) -> (i32, i32, i32) {
    %c0_i32 = arith.constant 0 : i32
    %c0_i32_0 = arith.constant 0 : i32
    %c0_i32_1 = arith.constant 0 : i32
    return %arg0, %c0_i32, %c0_i32_0 : i32, i32, i32
  }
}

</mosaic_0001>

<llo_original>
// kernel: tpu_custom_call.1
$region0: #{tpu_custom_call.1}
  #allocation0 [shape = 'u32[]', space=smem, size = 0x4, offset = 0x4, fixed_abs, tag = 'smem constant byte address 0x4 - core index']
  #allocation1 [shape = 'u32[144,128]{1,0:T(1,128)}', space=vmem, size = 0x12000, scoped, tag = 'internal scratch']
  %s0 = inlined_call_operand.hbm [shape: f32[2,16,256], index: 0, kind: input, shape index: {}]
  %s1 = inlined_call_operand.hbm [shape: f32[2,16,16], index: 1, kind: output, shape index: {}]
  %s2 = sld [smem:[#allocation0]]
  $region18: #{tpu_custom_call.1} parent=0
    _
  %s4 = ssub.s32 1, %s2
  %s5 = scalar_select 0, %s4, %s2
  $region1: #{tpu_custom_call.1} parent=0
    #allocation2 [shape = 'u8[32768]{0}', space=vmem, size = 0x8000, scoped, tag = 'input window, operand 0, single buffered']
    #allocation3 [shape = 's32[1]{0}', space=sflag, size = 0x4, scoped, tag = 'scoped memory for tpu_custom_call.1']
    #allocation4 [shape = 's32[1]{0}', space=sflag, size = 0x4, scoped, tag = 'scoped memory for tpu_custom_call.1']
    #allocation5 [shape = 'u8[16384]{0}', space=vmem, size = 0x4000, scoped, tag = 'output window, operand 0, single buffered']
    %6 = vsyncpa [#allocation3], 0
    %7 = vsyncpa [#allocation4], 0
    // Predicated region
    $region2: #{tpu_custom_call.1} parent=1 // pred_check
      _
    $region3: #{tpu_custom_call.1} parent=1 // pred_check_branch
      %9 = sbr.rel (0) target = $region5
    $region4: #{tpu_custom_call.1} parent=1 // pred_region
      %s11 = ssub.s32 1024, 1024
      %12 = vsyncadd [#allocation3], %s11
      %s13 = sshll.u32 [#allocation2], 4
      %s14 = int_to_ptr.vmem [resolvable:$true] %s13
      %19 = dma.hbm_to_vmem [thread:$0]  %s0, 1024, %s14, [#allocation3], 256, 256, 16
    $region5: #{tpu_custom_call.1} parent=1 // pred_fallthru
      _
    // Predicated region
    $region6: #{tpu_custom_call.1} parent=1 // pred_check
      _
    $region7: #{tpu_custom_call.1} parent=1 // pred_check_branch
      %21 = sbr.rel (0) target = $region9
    $region8: #{tpu_custom_call.1} parent=1 // pred_region
      %22 = dma.done [#allocation3], 1024
    $region9: #{tpu_custom_call.1} parent=1 // pred_fallthru
      _
    %v23 = vld [vmem:[#allocation2] sm:$0xff]
    %v24 = vld [vmem:[#allocation2 + $0x8] sm:$0xff]
    %v25 = vld [vmem:[#allocation2 + $0x10] sm:$0xff]
    %v26 = vld [vmem:[#allocation2 + $0x18] sm:$0xff]
    %v27 = vld [vmem:[#allocation2 + $0x20] sm:$0xff]
    %v28 = vld [vmem:[#allocation2 + $0x28] sm:$0xff]
    %v29 = vld [vmem:[#allocation2 + $0x30] sm:$0xff]
    %v30 = vld [vmem:[#allocation2 + $0x38] sm:$0xff]
    %v31 = vadd.f32 %v23, %v24
    %32 = vadd.xlane.f32.xlu0 %v31
    %v33 = vpop.xlane.xlu0 %32
    %v34 = vadd.f32 %v25, %v26
    %35 = vadd.xlane.f32.xlu0 %v34
    %v36 = vpop.xlane.xlu0 %35
    %v37 = vadd.f32 %v27, %v28
    %38 = vadd.xlane.f32.xlu0 %v37
    %v39 = vpop.xlane.xlu0 %38
    %v40 = vadd.f32 %v29, %v30
    %41 = vadd.xlane.f32.xlu0 %v40
    %v42 = vpop.xlane.xlu0 %41
    %v43 = vrcp.pop 256.0
    %v44 = vmul.f32 %v33, %v43
    %v45 = vmul.f32 %v36, %v43
    %v46 = vmul.f32 %v39, %v43
    %v47 = vmul.f32 %v42, %v43
    %v48 = vsub.f32 %v23, %v44
    %v49 = vsub.f32 %v24, %v44
    %v50 = vsub.f32 %v25, %v45
    %v51 = vsub.f32 %v26, %v45
    %v52 = vsub.f32 %v27, %v46
    %v53 = vsub.f32 %v28, %v46
    %v54 = vsub.f32 %v29, %v47
    %v55 = vsub.f32 %v30, %v47
    %56 = vmatprep.subr.mxu0 0.0
    %57 = vmatpush1.xpose.msra.mxu0 0.0
    %58 = vmatprep.subr.mxu0 0.0
    %59 = vmatpush1.xpose.msra.mxu0 0.0
    %60 = vmatprep.subr.mxu0 0.0
    %61 = vmatpush1.xpose.msra.mxu0 0.0
    %62 = vmatprep.subr.mxu0 0.0
    %63 = vmatpush1.xpose.msra.mxu0 0.0
    %64 = vmatprep.subr.mxu0 0.0
    %65 = vmatpush1.xpose.msra.mxu0 0.0
    %66 = vmatprep.subr.mxu0 0.0
    %67 = vmatpush1.xpose.msra.mxu0 0.0
    %68 = vmatprep.subr.mxu0 0.0
    %69 = vmatpush1.xpose.msra.mxu0 0.0
    %70 = vmatprep.subr.mxu0 0.0
    %71 = vmatpush1.xpose.msra.mxu0 0.0
    %72 = vmatprep.subr.mxu0 0.0
    %73 = vmatpush1.xpose.msra.mxu0 0.0
    %74 = vmatprep.subr.mxu0 0.0
    %75 = vmatpush1.xpose.msra.mxu0 0.0
    %76 = vmatprep.subr.mxu0 0.0
    %77 = vmatpush1.xpose.msra.mxu0 0.0
    %78 = vmatprep.subr.mxu0 0.0
    %79 = vmatpush1.xpose.msra.mxu0 0.0
    %80 = vmatprep.subr.mxu0 0.0
    %81 = vmatpush1.xpose.msra.mxu0 0.0
    %82 = vmatprep.subr.mxu0 0.0
    %83 = vmatpush1.xpose.msra.mxu0 0.0
    %84 = vmatprep.subr.mxu0 %v51
    %85 = vmatpush1.xpose.msra.mxu0 %v50
    %86 = vmatprep.subr.mxu0 %v49
    %87 = vmatpush1.xpose.msra.mxu0 %v48
    %88 = vmatprep.subr.mxu0 0.0
    %89 = vmatpush2.xpose.msra.mxu0 0.0
    %90 = vmatprep.subr.mxu0 0.0
    %91 = vmatpush2.xpose.msra.mxu0 0.0
    %92 = vmatprep.subr.mxu0 0.0
    %93 = vmatpush2.xpose.msra.mxu0 0.0
    %94 = vmatprep.subr.mxu0 0.0
    %95 = vmatpush2.xpose.msra.mxu0 0.0
    %96 = vmatprep.subr.mxu0 0.0
    %97 = vmatpush2.xpose.msra.mxu0 0.0
    %98 = vmatprep.subr.mxu0 0.0
    %99 = vmatpush2.xpose.msra.mxu0 0.0
    %100 = vmatprep.subr.mxu0 0.0
    %101 = vmatpush2.xpose.msra.mxu0 0.0
    %102 = vmatprep.subr.mxu0 0.0
    %103 = vmatpush2.xpose.msra.mxu0 0.0
    %104 = vmatprep.subr.mxu0 0.0
    %105 = vmatpush2.xpose.msra.mxu0 0.0
    %106 = vmatprep.subr.mxu0 0.0
    %107 = vmatpush2.xpose.msra.mxu0 0.0
    %108 = vmatprep.subr.mxu0 0.0
    %109 = vmatpush2.xpose.msra.mxu0 0.0
    %110 = vmatprep.subr.mxu0 0.0
    %111 = vmatpush2.xpose.msra.mxu0 0.0
    %112 = vmatprep.subr.mxu0 0.0
    %113 = vmatpush2.xpose.msra.mxu0 0.0
    %114 = vmatprep.subr.mxu0 0.0
    %115 = vmatpush2.xpose.msra.mxu0 0.0
    %116 = vmatprep.subr.mxu0 0.0
    %117 = vmatpush2.xpose.msra.mxu0 0.0
    %118 = vmatprep.subr.mxu0 0.0
    %119 = vmatpush2.xpose.msra.mxu0 0.0
    %120 = vmatprep.mubr.f32.mxu0 %v49
    %121 = vmatmul.mubr.f32.gmra.mxu0 %v48
    %v122 = vpop.f32.mrf.mxu0
    %v123 = vadd.f32 0.0, %v122
    %v124 = vpop.f32.mrf.mxu0
    %125 = vmatprep.mubr.f32.mxu0 %v51
    %126 = vmatmul.mubr.f32.gmra.mxu0 %v50
    %v127 = vpop.f32.mrf.mxu0
    %v128 = vadd.f32 0.0, %v127
    %v129 = vpop.f32.mrf.mxu0
    %130 = vdwg.mxu0
    %131 = vmatprep.subr.mxu0 0.0
    %132 = vmatpush1.xpose.msra.mxu0 0.0
    %133 = vmatprep.subr.mxu0 0.0
    %134 = vmatpush1.xpose.msra.mxu0 0.0
    %135 = vmatprep.subr.mxu0 0.0
    %136 = vmatpush1.xpose.msra.mxu0 0.0
    %137 = vmatprep.subr.mxu0 0.0
    %138 = vmatpush1.xpose.msra.mxu0 0.0
    %139 = vmatprep.subr.mxu0 0.0
    %140 = vmatpush1.xpose.msra.mxu0 0.0
    %141 = vmatprep.subr.mxu0 0.0
    %142 = vmatpush1.xpose.msra.mxu0 0.0
    %143 = vmatprep.subr.mxu0 0.0
    %144 = vmatpush1.xpose.msra.mxu0 0.0
    %145 = vmatprep.subr.mxu0 0.0
    %146 = vmatpush1.xpose.msra.mxu0 0.0
    %147 = vmatprep.subr.mxu0 0.0
    %148 = vmatpush1.xpose.msra.mxu0 0.0
    %149 = vmatprep.subr.mxu0 0.0
    %150 = vmatpush1.xpose.msra.mxu0 0.0
    %151 = vmatprep.subr.mxu0 0.0
    %152 = vmatpush1.xpose.msra.mxu0 0.0
    %153 = vmatprep.subr.mxu0 0.0
    %154 = vmatpush1.xpose.msra.mxu0 0.0
    %155 = vmatprep.subr.mxu0 0.0
    %156 = vmatpush1.xpose.msra.mxu0 0.0
    %157 = vmatprep.subr.mxu0 0.0
    %158 = vmatpush1.xpose.msra.mxu0 0.0
    %159 = vmatprep.subr.mxu0 %v55
    %160 = vmatpush1.xpose.msra.mxu0 %v54
    %161 = vmatprep.subr.mxu0 %v53
    %162 = vmatpush1.xpose.msra.mxu0 %v52
    %163 = vmatprep.subr.mxu0 0.0
    %164 = vmatpush2.xpose.msra.mxu0 0.0
    %165 = vmatprep.subr.mxu0 0.0
    %166 = vmatpush2.xpose.msra.mxu0 0.0
    %167 = vmatprep.subr.mxu0 0.0
    %168 = vmatpush2.xpose.msra.mxu0 0.0
    %169 = vmatprep.subr.mxu0 0.0
    %170 = vmatpush2.xpose.msra.mxu0 0.0
    %171 = vmatprep.subr.mxu0 0.0
    %172 = vmatpush2.xpose.msra.mxu0 0.0
    %173 = vmatprep.subr.mxu0 0.0
    %174 = vmatpush2.xpose.msra.mxu0 0.0
    %175 = vmatprep.subr.mxu0 0.0
    %176 = vmatpush2.xpose.msra.mxu0 0.0
    %177 = vmatprep.subr.mxu0 0.0
    %178 = vmatpush2.xpose.msra.mxu0 0.0
    %179 = vmatprep.subr.mxu0 0.0
    %180 = vmatpush2.xpose.msra.mxu0 0.0
    %181 = vmatprep.subr.mxu0 0.0
    %182 = vmatpush2.xpose.msra.mxu0 0.0
    %183 = vmatprep.subr.mxu0 0.0
    %184 = vmatpush2.xpose.msra.mxu0 0.0
    %185 = vmatprep.subr.mxu0 0.0
    %186 = vmatpush2.xpose.msra.mxu0 0.0
    %187 = vmatprep.subr.mxu0 0.0
    %188 = vmatpush2.xpose.msra.mxu0 0.0
    %189 = vmatprep.subr.mxu0 0.0
    %190 = vmatpush2.xpose.msra.mxu0 0.0
    %191 = vmatprep.subr.mxu0 0.0
    %192 = vmatpush2.xpose.msra.mxu0 0.0
    %193 = vmatprep.subr.mxu0 0.0
    %194 = vmatpush2.xpose.msra.mxu0 0.0
    %195 = vmatprep.mubr.f32.mxu0 %v53
    %196 = vmatmul.mubr.f32.gmra.mxu0 %v52
    %v197 = vpop.f32.mrf.mxu0
    %v198 = vadd.f32 0.0, %v197
    %v199 = vpop.f32.mrf.mxu0
    %200 = vmatprep.mubr.f32.mxu0 %v55
    %201 = vmatmul.mubr.f32.gmra.mxu0 %v54
    %v202 = vpop.f32.mrf.mxu0
    %v203 = vadd.f32 0.0, %v202
    %v204 = vpop.f32.mrf.mxu0
    %205 = vdwg.mxu0
    %v206 = vmul.f32 %v123, 0.00390625
    %v207 = vmul.f32 %v128, 0.00390625
    %v208 = vmul.f32 %v198, 0.00390625
    %v209 = vmul.f32 %v203, 0.00390625
    %vm210 = vcmask 130048
    %211 = vst.msk [vmem:[#allocation5] sm:$0xff] %vm210, %v206
    %212 = vst.msk [vmem:[#allocation5 + $0x8] sm:$0xff] %vm210, %v207
    %213 = vst.msk [vmem:[#allocation5 + $0x10] sm:$0xff] %vm210, %v208
    %214 = vst.msk [vmem:[#allocation5 + $0x18] sm:$0xff] %vm210, %v209
    // Predicated region
    $region10: #{tpu_custom_call.1} parent=1 // pred_check
      _
    $region11: #{tpu_custom_call.1} parent=1 // pred_check_branch
      %216 = sbr.rel (0) target = $region13
    $region12: #{tpu_custom_call.1} parent=1 // pred_region
      %s218 = ssub.s32 512, 512
      %219 = vsyncadd [#allocation4], %s218
      %s220 = sshll.u32 [#allocation5], 4
      %s221 = int_to_ptr.vmem [resolvable:$true] %s220
      %226 = dma.vmem_to_hbm [thread:$0]  %s221, 512, %s1, [#allocation4], 128, 128, 8
    $region13: #{tpu_custom_call.1} parent=1 // pred_fallthru
      _
    // Predicated region
    $region14: #{tpu_custom_call.1} parent=1 // pred_check
      _
    $region15: #{tpu_custom_call.1} parent=1 // pred_check_branch
      %228 = sbr.rel (0) target = $region17
    $region16: #{tpu_custom_call.1} parent=1 // pred_region
      %229 = dma.done [#allocation4], 512
    $region17: #{tpu_custom_call.1} parent=1 // pred_fallthru
      _
    %230 = vsyncpa [#allocation3], 1
    %231 = vsyncpa [#allocation4], 1

</llo_original>
